<compile_context>
chip_gen: v6e
topology: v6e:2x2x1
jax: 0.10.0
libtpu: 0.0.40
codegen_flags: <defaults>
</compile_context>

<pallas_src>
import functools

import jax
import jax.numpy as jnp
from jax import lax
from jax.experimental import pallas as pl
from jax.experimental.pallas import tpu as pltpu


def _round_up(v: int, m: int) -> int:
    return ((v + m - 1) // m) * m


# --------------------------------------------------------------------------
# Kernels
# --------------------------------------------------------------------------

def _linear_full_k_kernel(x_ref, w_ref, o_ref):
    """Whole K reduction in one shot: o = x @ w.T (f32 accumulation on MXU).

    x_ref: [tm, Kp]   w_ref: [tn, Kp]   o_ref: [tm, tn]
    """
    o_ref[...] = lax.dot_general(
        x_ref[...],
        w_ref[...],
        dimension_numbers=(((1,), (1,)), ((), ())),
        preferred_element_type=jnp.float32,
    ).astype(o_ref.dtype)


def _linear_split_k_f32_kernel(x_ref, w_ref, o_ref):
    """K-split reduction accumulating directly into the resident f32 output."""
    @pl.when(pl.program_id(2) == 0)
    def _():
        o_ref[...] = jnp.zeros_like(o_ref)

    o_ref[...] += lax.dot_general(
        x_ref[...],
        w_ref[...],
        dimension_numbers=(((1,), (1,)), ((), ())),
        preferred_element_type=jnp.float32,
    )


def _linear_split_k_acc_kernel(x_ref, w_ref, o_ref, acc_ref):
    """K-split reduction with an f32 VMEM accumulator (non-f32 outputs only)."""
    @pl.when(pl.program_id(2) == 0)
    def _():
        acc_ref[...] = jnp.zeros_like(acc_ref)

    acc_ref[...] += lax.dot_general(
        x_ref[...],
        w_ref[...],
        dimension_numbers=(((1,), (1,)), ((), ())),
        preferred_element_type=jnp.float32,
    )

    @pl.when(pl.program_id(2) == pl.num_programs(2) - 1)
    def _():
        o_ref[...] = acc_ref[...].astype(o_ref.dtype)


# --------------------------------------------------------------------------
# Wrapper
# --------------------------------------------------------------------------

@functools.partial(
    jax.jit,
    static_argnames=("tm", "tn", "tk", "operand_dtype", "vmem_budget_bytes"),
)
def linear_map(
    x,
    w,
    *,
    tm: int = 256,
    tn: int = 512,
    tk: int | None = None,
    operand_dtype=None,
    vmem_budget_bytes: int = 10 * 1024 * 1024,
):
    """y = x @ w.T  (PyTorch nn.Linear(bias=False) semantics).

    x: [..., K]     (any leading batch dims, like nn.Linear)
    w: [N, K]       (PyTorch weight layout: [out_features, in_features])
    returns: [..., N] in x.dtype (f32 MXU accumulation).

    `operand_dtype` is opt-in (e.g. jnp.bfloat16) — the default keeps native
    dtype so f32 inputs follow nn.Linear f32 numerics with no extra HBM pass.
    """
    # Optional (opt-in) operand cast, e.g. bf16 weights/activations.
    if operand_dtype is not None:
        x = x.astype(operand_dtype)
        w = w.astype(operand_dtype)
    if x.dtype != w.dtype:
        common = jnp.promote_types(x.dtype, w.dtype)
        x = x.astype(common)
        w = w.astype(common)

    orig_lead = x.shape[:-1]
    K = x.shape[-1]
    N, K2 = w.shape
    assert K == K2, "weight in_features must match x feature dim"

    x2 = x.reshape(-1, K)
    M = x2.shape[0]

    in_dtype = x2.dtype
    out_dtype = x2.dtype
    in_itemsize = jnp.dtype(in_dtype).itemsize
    out_itemsize = jnp.dtype(out_dtype).itemsize

    # Sublane packing: 8 rows / vreg for 4-byte, 16 for 2-byte, 32 for 1-byte.
    row_align = max(8, 32 // in_itemsize)

    tm_e = min(tm, _round_up(M, row_align))
    tn_e = min(tn, _round_up(N, 128))

    # Keep >= 2 lane-aligned N tiles when M collapses to a single tile so the
    # "parallel" grid axes can still shard across v7x's two TensorCores.
    Np0 = _round_up(N, 128)
    if M <= tm_e and Np0 >= 256 and Np0 <= tn_e:
        tn_e = _round_up(Np0 // 2, 128)

    Kp_lane = _round_up(K, 128)

    # Auto-pick tk: take the whole K whenever the double-buffered x/W panels
    # plus the output tile fit the VMEM budget; otherwise the largest
    # lane-aligned chunk that does.
    if tk is None:
        out_bytes = tm_e * tn_e * out_itemsize * 2
        per_k_bytes = (tm_e + tn_e) * in_itemsize * 2  # double-buffered x + W
        tk_cap = max(
            ((vmem_budget_bytes - out_bytes) // max(per_k_bytes, 1)) // 128 * 128,
            128,
        )
        tk_e = Kp_lane if Kp_lane <= tk_cap else tk_cap
    else:
        tk_e = min(_round_up(tk, 128), Kp_lane)

    Mp = _round_up(M, tm_e)
    Np = _round_up(N, tn_e)
    Kp = _round_up(K, tk_e)

    # Zero-pad ragged edges only (zeros are neutral for the K reduction; extra
    # N columns / M rows are sliced off below).  Aligned shapes pay nothing.
    if (Mp, Kp) != (M, K):
        x2 = jnp.pad(x2, ((0, Mp - M), (0, Kp - K)))
    w_op = w
    if (Np, Kp) != (N, K):
        w_op = jnp.pad(w_op, ((0, Np - N), (0, Kp - K)))

    full_k = tk_e == Kp
    if full_k:
        grid = (Mp // tm_e, Np // tn_e)
        in_specs = [
            pl.BlockSpec((tm_e, tk_e), lambda i, j: (i, 0)),  # x panel
            pl.BlockSpec((tn_e, tk_e), lambda i, j: (j, 0)),  # W panel (no transpose)
        ]
        out_specs = pl.BlockSpec((tm_e, tn_e), lambda i, j: (i, j))
        kernel = _linear_full_k_kernel
        scratch = []
        semantics = ("parallel", "parallel")
    else:
        grid = (Mp // tm_e, Np // tn_e, Kp // tk_e)
        in_specs = [
            pl.BlockSpec((tm_e, tk_e), lambda i, j, k: (i, k)),
            pl.BlockSpec((tn_e, tk_e), lambda i, j, k: (j, k)),
        ]
        out_specs = pl.BlockSpec((tm_e, tn_e), lambda i, j, k: (i, j))
        semantics = ("parallel", "parallel", "arbitrary")
        if jnp.dtype(out_dtype) == jnp.dtype(jnp.float32):
            kernel = _linear_split_k_f32_kernel
            scratch = []
        else:
            kernel = _linear_split_k_acc_kernel
            scratch = [pltpu.VMEM((tm_e, tn_e), jnp.float32)]

    out = pl.pallas_call(
        kernel,
        out_shape=jax.ShapeDtypeStruct((Mp, Np), out_dtype),
        grid_spec=pltpu.PrefetchScalarGridSpec(
            num_scalar_prefetch=0,
            grid=grid,
            in_specs=in_specs,
            out_specs=out_specs,
            scratch_shapes=scratch,
        ),
        compiler_params=pltpu.CompilerParams(dimension_semantics=semantics),
    )(x2, w_op)

    if (Mp, Np) != (M, N):
        out = out[:M, :N]
    return out.reshape(*orig_lead, N)


if __name__ == "__main__":
    key = jax.random.PRNGKey(0)
    kx, kw = jax.random.split(key)

    batch = 8
    input_dim = 32

    x = jax.random.normal(kx, (batch, input_dim), dtype=jnp.float32)
    # Deterministic weight init mimicking nn.Linear's uniform(-1/sqrt(in), 1/sqrt(in)).
    bound = 1.0 / jnp.sqrt(jnp.float32(input_dim))
    w = jax.random.uniform(
        kw, (input_dim, input_dim), dtype=jnp.float32, minval=-bound, maxval=bound
    )

    y = linear_map(x, w)
    jax.block_until_ready(y)

    # Correctness vs. the plain-JAX reference of nn.Linear(bias=False).
    y_ref = x @ w.T
    assert y.shape == (batch, input_dim)
    assert y.dtype == x.dtype
    assert jnp.allclose(y, y_ref, atol=5e-3, rtol=5e-3), (
        float(jnp.max(jnp.abs(y - y_ref)))
    )

    print("KERNEL_OK")
</pallas_src>

<mosaic_0001>
module attributes {stable_mosaic.version = 11 : i64} {
  func.func @_linear_full_k_kernel(%arg0: i32, %arg1: i32, %arg2: memref<8x128xf32, #tpu.memory_space<vmem>>, %arg3: memref<128x128xf32, #tpu.memory_space<vmem>>, %arg4: memref<8x128xf32, #tpu.memory_space<vmem>>) attributes {dimension_semantics = [#tpu.dimension_semantics<parallel>, #tpu.dimension_semantics<parallel>], iteration_bounds = array<i64: 1, 1>, scalar_prefetch = 0 : i64, scratch_operands = 0 : i64, tpu.core_type = #tpu.core_type<tc>, window_params = [{transform_indices = @transform_0, window_bounds = array<i64: 8, 128>}, {transform_indices = @transform_1, window_bounds = array<i64: 128, 128>}, {transform_indices = @transform_2, window_bounds = array<i64: 8, 128>}]} {
    %c0 = arith.constant 0 : index
    %c0_0 = arith.constant 0 : index
    %0 = vector.load %arg2[%c0, %c0_0] : memref<8x128xf32, #tpu.memory_space<vmem>>, vector<8x128xf32>
    %c0_1 = arith.constant 0 : index
    %c0_2 = arith.constant 0 : index
    %1 = vector.load %arg3[%c0_1, %c0_2] : memref<128x128xf32, #tpu.memory_space<vmem>>, vector<128x128xf32>
    %cst = arith.constant dense<0.000000e+00> : vector<8x128xf32>
    %2 = tpu.matmul %0, %1, %cst {dimension_numbers = #tpu.dot_dimension_numbers<[1], [1], [0], [0], [0, 0, 1, 0], [], []>} : vector<8x128xf32>, vector<128x128xf32>, vector<8x128xf32> -> vector<8x128xf32>
    %c0_3 = arith.constant 0 : index
    %c0_4 = arith.constant 0 : index
    %3 = vector.load %arg4[%c0_3, %c0_4] : memref<8x128xf32, #tpu.memory_space<vmem>>, vector<8x128xf32>
    tpu.vector_store %arg4[%c0_3, %c0_4], %2 {strides = array<i32>} : memref<8x128xf32, #tpu.memory_space<vmem>>, vector<8x128xf32>,
    return
  }
  func.func @transform_0(%arg0: i32, %arg1: i32) -> (i32, i32) {
    %c0_i32 = arith.constant 0 : i32
    %c0_i32_0 = arith.constant 0 : i32
    return %arg0, %c0_i32 : i32, i32
  }
  func.func @transform_1(%arg0: i32, %arg1: i32) -> (i32, i32) {
    %c0_i32 = arith.constant 0 : i32
    %c0_i32_0 = arith.constant 0 : i32
    return %arg1, %c0_i32 : i32, i32
  }
  func.func @transform_2(%arg0: i32, %arg1: i32) -> (i32, i32) {
    %c0_i32 = arith.constant 0 : i32
    return %arg0, %arg1 : i32, i32
  }
}

</mosaic_0001>

<llo_original>
// kernel: linear_map.1
$region0: #{linear_map.1}
  #allocation0 [shape = 'u32[]', space=smem, size = 0x4, offset = 0x4, fixed_abs, tag = 'smem constant byte address 0x4 - core index']
  #allocation1 [shape = 'u32[144,128]{1,0:T(1,128)}', space=vmem, size = 0x12000, scoped, tag = 'internal scratch']
  %s0 = inlined_call_operand.vmem [shape: f32[8,128], index: 0, kind: input, shape index: {}]
  %s1 = inlined_call_operand.vmem [shape: f32[128,128], index: 1, kind: input, shape index: {}]
  %s2 = inlined_call_operand.hbm [shape: f32[8,128], index: 2, kind: output, shape index: {}]
  %s3 = sld [smem:[#allocation0]]
  $region18: #{linear_map.1} parent=0
    _
  %s5 = ssub.s32 1, %s3
  %s6 = scalar_select 0, %s5, %s3
  $region1: #{linear_map.1} parent=0
    #allocation2 [shape = 'u8[4096]{0}', space=vmem, size = 0x1000, scoped, tag = 'output window, operand 0, single buffered']
    #allocation3 [shape = 's32[1]{0}', space=sflag, size = 0x4, scoped, tag = 'scoped memory for linear_map.1']
    %7 = vsyncpa [#allocation3], 0
    // Predicated region
    $region2: #{linear_map.1} parent=1 // pred_check
      _
    $region3: #{linear_map.1} parent=1 // pred_check_branch
      %9 = sbr.rel (0) target = $region5
    $region4: #{linear_map.1} parent=1 // pred_region
      _
    $region5: #{linear_map.1} parent=1 // pred_fallthru
      _
    // Predicated region
    $region6: #{linear_map.1} parent=1 // pred_check
      _
    $region7: #{linear_map.1} parent=1 // pred_check_branch
      %11 = sbr.rel (0) target = $region9
    $region8: #{linear_map.1} parent=1 // pred_region
      _
    $region9: #{linear_map.1} parent=1 // pred_fallthru
      _
    %v12 = vld [vmem:[%s0] sm:$0xff]
    %v13 = vld [vmem:[%s1] sm:$0xff]
    %v14 = vld [vmem:[%s1 + $0x8] sm:$0xff]
    %v15 = vld [vmem:[%s1 + $0x10] sm:$0xff]
    %v16 = vld [vmem:[%s1 + $0x18] sm:$0xff]
    %v17 = vld [vmem:[%s1 + $0x20] sm:$0xff]
    %v18 = vld [vmem:[%s1 + $0x28] sm:$0xff]
    %v19 = vld [vmem:[%s1 + $0x30] sm:$0xff]
    %v20 = vld [vmem:[%s1 + $0x38] sm:$0xff]
    %v21 = vld [vmem:[%s1 + $0x40] sm:$0xff]
    %v22 = vld [vmem:[%s1 + $0x48] sm:$0xff]
    %v23 = vld [vmem:[%s1 + $0x50] sm:$0xff]
    %v24 = vld [vmem:[%s1 + $0x58] sm:$0xff]
    %v25 = vld [vmem:[%s1 + $0x60] sm:$0xff]
    %v26 = vld [vmem:[%s1 + $0x68] sm:$0xff]
    %v27 = vld [vmem:[%s1 + $0x70] sm:$0xff]
    %v28 = vld [vmem:[%s1 + $0x78] sm:$0xff]
    %29 = vmatprep.subr.mxu0 0.0
    %30 = vmatpush1.xpose.msra.mxu0 %v28
    %31 = vmatprep.subr.mxu0 0.0
    %32 = vmatpush1.xpose.msra.mxu0 %v27
    %33 = vmatprep.subr.mxu0 0.0
    %34 = vmatpush1.xpose.msra.mxu0 %v26
    %35 = vmatprep.subr.mxu0 0.0
    %36 = vmatpush1.xpose.msra.mxu0 %v25
    %37 = vmatprep.subr.mxu0 0.0
    %38 = vmatpush1.xpose.msra.mxu0 %v24
    %39 = vmatprep.subr.mxu0 0.0
    %40 = vmatpush1.xpose.msra.mxu0 %v23
    %41 = vmatprep.subr.mxu0 0.0
    %42 = vmatpush1.xpose.msra.mxu0 %v22
    %43 = vmatprep.subr.mxu0 0.0
    %44 = vmatpush1.xpose.msra.mxu0 %v21
    %45 = vmatprep.subr.mxu0 0.0
    %46 = vmatpush1.xpose.msra.mxu0 %v20
    %47 = vmatprep.subr.mxu0 0.0
    %48 = vmatpush1.xpose.msra.mxu0 %v19
    %49 = vmatprep.subr.mxu0 0.0
    %50 = vmatpush1.xpose.msra.mxu0 %v18
    %51 = vmatprep.subr.mxu0 0.0
    %52 = vmatpush1.xpose.msra.mxu0 %v17
    %53 = vmatprep.subr.mxu0 0.0
    %54 = vmatpush1.xpose.msra.mxu0 %v16
    %55 = vmatprep.subr.mxu0 0.0
    %56 = vmatpush1.xpose.msra.mxu0 %v15
    %57 = vmatprep.subr.mxu0 0.0
    %58 = vmatpush1.xpose.msra.mxu0 %v14
    %59 = vmatprep.subr.mxu0 0.0
    %60 = vmatpush1.xpose.msra.mxu0 %v13
    %61 = vmatprep.subr.mxu0 0.0
    %62 = vmatpush2.xpose.msra.mxu0 0.0
    %63 = vmatprep.subr.mxu0 0.0
    %64 = vmatpush2.xpose.msra.mxu0 0.0
    %65 = vmatprep.subr.mxu0 0.0
    %66 = vmatpush2.xpose.msra.mxu0 0.0
    %67 = vmatprep.subr.mxu0 0.0
    %68 = vmatpush2.xpose.msra.mxu0 0.0
    %69 = vmatprep.subr.mxu0 0.0
    %70 = vmatpush2.xpose.msra.mxu0 0.0
    %71 = vmatprep.subr.mxu0 0.0
    %72 = vmatpush2.xpose.msra.mxu0 0.0
    %73 = vmatprep.subr.mxu0 0.0
    %74 = vmatpush2.xpose.msra.mxu0 0.0
    %75 = vmatprep.subr.mxu0 0.0
    %76 = vmatpush2.xpose.msra.mxu0 0.0
    %77 = vmatprep.subr.mxu0 0.0
    %78 = vmatpush2.xpose.msra.mxu0 0.0
    %79 = vmatprep.subr.mxu0 0.0
    %80 = vmatpush2.xpose.msra.mxu0 0.0
    %81 = vmatprep.subr.mxu0 0.0
    %82 = vmatpush2.xpose.msra.mxu0 0.0
    %83 = vmatprep.subr.mxu0 0.0
    %84 = vmatpush2.xpose.msra.mxu0 0.0
    %85 = vmatprep.subr.mxu0 0.0
    %86 = vmatpush2.xpose.msra.mxu0 0.0
    %87 = vmatprep.subr.mxu0 0.0
    %88 = vmatpush2.xpose.msra.mxu0 0.0
    %89 = vmatprep.subr.mxu0 0.0
    %90 = vmatpush2.xpose.msra.mxu0 0.0
    %91 = vmatprep.subr.mxu0 0.0
    %92 = vmatpush2.xpose.msra.mxu0 0.0
    %93 = vmatprep.mubr.f32.mxu0 0.0
    %94 = vmatmul.mubr.f32.gmra.mxu0 %v12
    %v95 = vpop.f32.mrf.mxu0
    %v96 = vadd.f32 0.0, %v95
    %v97 = vpop.f32.mrf.mxu0
    %98 = vdwg.mxu0
    %99 = vst [vmem:[#allocation2] sm:$0xff] %v96
    // Predicated region
    $region10: #{linear_map.1} parent=1 // pred_check
      _
    $region11: #{linear_map.1} parent=1 // pred_check_branch
      %101 = sbr.rel (0) target = $region13
    $region12: #{linear_map.1} parent=1 // pred_region
      %s103 = ssub.s32 128, 128
      %104 = vsyncadd [#allocation3], %s103
      %s106 = sshll.u32 [#allocation2], 4
      %s107 = int_to_ptr.vmem [resolvable:$true] %s106
      %109 = dma.vmem_to_hbm [thread:$0]  %s107, 128, %s2, [#allocation3]
    $region13: #{linear_map.1} parent=1 // pred_fallthru
      _
    // Predicated region
    $region14: #{linear_map.1} parent=1 // pred_check
      _
    $region15: #{linear_map.1} parent=1 // pred_check_branch
      %111 = sbr.rel (0) target = $region17
    $region16: #{linear_map.1} parent=1 // pred_region
      %112 = dma.done [#allocation3], 128
    $region17: #{linear_map.1} parent=1 // pred_fallthru
      _
    %113 = vsyncpa [#allocation3], 1

</llo_original>
